<compile_context>
chip_gen: v7x
topology: tpu7x:2x2x1
jax: 0.10.0
libtpu: 0.0.40
codegen_flags: <defaults>
</compile_context>

<pallas_src>
import jax
import jax.numpy as jnp
import numpy as np
from jax.experimental import pallas as pl
from jax.experimental.pallas import tpu as pltpu

HIDDEN = 256


def _round_up(n: int, m: int) -> int:
    return ((n + m - 1) // m) * m


def _is_v7x() -> bool:
    """Best-effort chip detection (2 TensorCores per chip on v7x)."""
    try:
        return "v7" in jax.devices()[0].device_kind.lower()
    except Exception:
        return False


def _pick_batch_tile(B: int, max_batch_tile: int) -> int:
    """Batch tile (multiple of 8 sublanes).

    v5e/v6e (1 TC): one grid step for the whole batch when it fits the cap.
    v7x (2 TCs): split into 2 'parallel' steps when the batch is big enough.
    """
    n_split = 2 if (_is_v7x() and B >= 16) else 1
    tb = _round_up(pl.cdiv(B, n_split), 8)
    return min(tb, max_batch_tile)


def _pad_last_to(a, n: int):
    pad = n - a.shape[-1]
    if pad <= 0:
        return a
    return jnp.pad(a, [(0, 0)] * (a.ndim - 1) + [(0, pad)])


def actor_td3_kernel(x_ref, w1_ref, b1_ref, w2_ref, b2_ref, w3_ref, b3_ref,
                     scale_ref, bias_ref, out_ref):
    # fc1 in full f32 (K = obs_dim is tiny; keeps numerics close to the f32
    # PyTorch model), f32 bias + relu on the VPU.
    h1 = jnp.dot(x_ref[...], w1_ref[...], preferred_element_type=jnp.float32)
    h1 = jnp.maximum(h1 + b1_ref[...], 0.0)
    # fc2 + relu: bf16 MXU operands, f32 accumulate, f32 elementwise.
    h2 = jnp.dot(h1.astype(jnp.bfloat16), w2_ref[...],
                 preferred_element_type=jnp.float32)
    h2 = jnp.maximum(h2 + b2_ref[...], 0.0)
    # fc_mu + tanh (lane-dense: act_dim padded to 128 lanes; padded lanes are
    # all-zero weights/bias/scale so they stay 0 and are sliced off outside).
    mu = jnp.dot(h2.astype(jnp.bfloat16), w3_ref[...],
                 preferred_element_type=jnp.float32)
    mu = jnp.tanh(mu + b3_ref[...])
    # action rescale
    out_ref[...] = mu * scale_ref[...] + bias_ref[...]


def actor_td3_forward(x, params, *, max_batch_tile=1024):
    """x: (B, obs_dim) float32. params: w1/biases/scale/bias f32, w2/w3 bf16."""
    B, obs_dim = x.shape
    act_dim = params["w3"].shape[1]
    act_pad = _round_up(act_dim, 128)  # lane-dense fc3 result / output slab

    TB = _pick_batch_tile(B, max_batch_tile)
    B_pad = _round_up(B, TB)
    if B_pad != B:
        x = jnp.pad(x, ((0, B_pad - B), (0, 0)))
    grid = (B_pad // TB,)

    # Zero-pad the act_dim side so the last dim of the fc3 operands / output is
    # a full 128-lane multiple (unmasked vector stores).
    w3 = _pad_last_to(params["w3"], act_pad)
    b3 = _pad_last_to(params["b3"], act_pad)
    scale = _pad_last_to(params["scale"], act_pad)
    bias = _pad_last_to(params["bias"], act_pad)

    const = lambda i: (0, 0)  # weights/biases: same block every step -> VMEM-resident
    in_specs = [
        pl.BlockSpec((TB, obs_dim), lambda i: (i, 0)),   # x tile (f32)
        pl.BlockSpec((obs_dim, HIDDEN), const),          # w1 (f32)
        pl.BlockSpec((1, HIDDEN), const),                # b1 (f32)
        pl.BlockSpec((HIDDEN, HIDDEN), const),           # w2 (bf16)
        pl.BlockSpec((1, HIDDEN), const),                # b2 (f32)
        pl.BlockSpec((HIDDEN, act_pad), const),          # w3 (bf16, lane-padded)
        pl.BlockSpec((1, act_pad), const),               # b3 (f32, lane-padded)
        pl.BlockSpec((1, act_pad), const),               # action_scale (f32, padded)
        pl.BlockSpec((1, act_pad), const),               # action_bias  (f32, padded)
    ]
    out_specs = pl.BlockSpec((TB, act_pad), lambda i: (i, 0))

    flops = 2 * B_pad * (obs_dim * HIDDEN + HIDDEN * HIDDEN + HIDDEN * act_pad)
    weight_arrays = (params["w1"], params["b1"], params["w2"], params["b2"],
                     w3, b3, scale, bias)
    weight_bytes = sum(int(np.prod(a.shape)) * a.dtype.itemsize
                       for a in weight_arrays)
    bytes_accessed = B_pad * obs_dim * 4 + B_pad * act_pad * 4 + weight_bytes
    cost = pl.CostEstimate(flops=flops,
                           transcendentals=B_pad * act_pad,
                           bytes_accessed=bytes_accessed)

    out = pl.pallas_call(
        actor_td3_kernel,
        out_shape=jax.ShapeDtypeStruct((B_pad, act_pad), jnp.float32),
        grid=grid,
        in_specs=in_specs,
        out_specs=out_specs,
        compiler_params=pltpu.CompilerParams(
            dimension_semantics=("parallel",),  # shard batch tiles across TCs (v7x)
            vmem_limit_bytes=32 * 1024 * 1024,
        ),
        cost_estimate=cost,
    )(x, params["w1"], params["b1"], params["w2"], params["b2"],
      w3, b3, scale, bias)

    return out[:B, :act_dim]


def init_params(key, obs_dim, act_dim, action_high, action_low):
    """Deterministic init mimicking PyTorch nn.Linear default (uniform ±1/sqrt(fan_in)).
    Weights stored transposed vs. PyTorch, i.e. (in_features, out_features).
    w1 stays f32 (f32 fc1); w2/w3 are bf16 MXU weights; biases/scale/bias f32."""
    ks = jax.random.split(key, 6)

    def linear(kw, kb, fan_in, fan_out, w_dtype):
        bound = 1.0 / np.sqrt(fan_in)
        w = jax.random.uniform(kw, (fan_in, fan_out), jnp.float32, -bound, bound)
        b = jax.random.uniform(kb, (1, fan_out), jnp.float32, -bound, bound)
        return w.astype(w_dtype), b

    w1, b1 = linear(ks[0], ks[1], obs_dim, HIDDEN, jnp.float32)
    w2, b2 = linear(ks[2], ks[3], HIDDEN, HIDDEN, jnp.bfloat16)
    w3, b3 = linear(ks[4], ks[5], HIDDEN, act_dim, jnp.bfloat16)
    scale = ((action_high - action_low) / 2.0).astype(np.float32).reshape(1, act_dim)
    bias = ((action_high + action_low) / 2.0).astype(np.float32).reshape(1, act_dim)
    return {
        "w1": w1, "b1": b1,
        "w2": w2, "b2": b2,
        "w3": w3, "b3": b3,
        "scale": jnp.asarray(scale), "bias": jnp.asarray(bias),
    }


def actor_td3_reference(x, p):
    """Pure-JAX f32 reference (bf16 weights upcast)."""
    w1 = p["w1"].astype(jnp.float32)
    w2 = p["w2"].astype(jnp.float32)
    w3 = p["w3"].astype(jnp.float32)
    h1 = jnp.maximum(x @ w1 + p["b1"], 0.0)
    h2 = jnp.maximum(h1 @ w2 + p["b2"], 0.0)
    mu = jnp.tanh(h2 @ w3 + p["b3"])
    return mu * p["scale"] + p["bias"]


if __name__ == "__main__":
    # Small synthetic env: observation_space.shape = (8,), action_space.shape = (4,)
    obs_dim, act_dim = 8, 4
    action_high = np.full((act_dim,), 2.0, dtype=np.float32)
    action_low = np.full((act_dim,), -2.0, dtype=np.float32)

    key = jax.random.PRNGKey(0)
    k_params, k_x1, k_x2 = jax.random.split(key, 3)
    params = init_params(k_params, obs_dim, act_dim, action_high, action_low)

    # Test 1: tiny batch (single tile).
    x_small = jax.random.normal(k_x1, (2, obs_dim), dtype=jnp.float32)
    out_small = jax.block_until_ready(actor_td3_forward(x_small, params))
    ref_small = actor_td3_reference(x_small, params)
    assert out_small.shape == (2, act_dim)
    np.testing.assert_allclose(np.asarray(out_small), np.asarray(ref_small),
                               rtol=2e-2, atol=2e-2)  # bf16 fc2/fc3 -> looser tol

    # Test 2: batch not divisible by 8 (exercises padding; single step on 1-TC
    # chips, two "parallel" steps on v7x).
    x_big = jax.random.normal(k_x2, (300, obs_dim), dtype=jnp.float32)
    out_big = jax.block_until_ready(actor_td3_forward(x_big, params))
    ref_big = actor_td3_reference(x_big, params)
    assert out_big.shape == (300, act_dim)
    np.testing.assert_allclose(np.asarray(out_big), np.asarray(ref_big),
                               rtol=2e-2, atol=2e-2)

    print("KERNEL_OK")
</pallas_src>

<mosaic_0001>
module attributes {stable_mosaic.version = 11 : i64} {
  func.func @actor_td3_kernel(%arg0: i32, %arg1: memref<8x8xf32, #tpu.memory_space<vmem>>, %arg2: memref<8x256xf32, #tpu.memory_space<vmem>>, %arg3: memref<1x256xf32, #tpu.memory_space<vmem>>, %arg4: memref<256x256xbf16, #tpu.memory_space<vmem>>, %arg5: memref<1x256xf32, #tpu.memory_space<vmem>>, %arg6: memref<256x128xbf16, #tpu.memory_space<vmem>>, %arg7: memref<1x128xf32, #tpu.memory_space<vmem>>, %arg8: memref<1x128xf32, #tpu.memory_space<vmem>>, %arg9: memref<1x128xf32, #tpu.memory_space<vmem>>, %arg10: memref<8x128xf32, #tpu.memory_space<vmem>>) attributes {dimension_semantics = [#tpu.dimension_semantics<parallel>], iteration_bounds = array<i64: 1>, scalar_prefetch = 0 : i64, scratch_operands = 0 : i64, tpu.core_type = #tpu.core_type<tc>, window_params = [{transform_indices = @transform_0, window_bounds = array<i64: 8, 8>}, {pipeline_mode = #tpu.pipeline_mode<synchronous>, transform_indices = @transform_1, window_bounds = array<i64: 8, 256>}, {pipeline_mode = #tpu.pipeline_mode<synchronous>, transform_indices = @transform_2, window_bounds = array<i64: 1, 256>}, {pipeline_mode = #tpu.pipeline_mode<synchronous>, transform_indices = @transform_3, window_bounds = array<i64: 256, 256>}, {pipeline_mode = #tpu.pipeline_mode<synchronous>, transform_indices = @transform_4, window_bounds = array<i64: 1, 256>}, {pipeline_mode = #tpu.pipeline_mode<synchronous>, transform_indices = @transform_5, window_bounds = array<i64: 256, 128>}, {pipeline_mode = #tpu.pipeline_mode<synchronous>, transform_indices = @transform_6, window_bounds = array<i64: 1, 128>}, {pipeline_mode = #tpu.pipeline_mode<synchronous>, transform_indices = @transform_7, window_bounds = array<i64: 1, 128>}, {pipeline_mode = #tpu.pipeline_mode<synchronous>, transform_indices = @transform_8, window_bounds = array<i64: 1, 128>}, {transform_indices = @transform_9, window_bounds = array<i64: 8, 128>}]} {
    %c0 = arith.constant 0 : index
    %c0_0 = arith.constant 0 : index
    %0 = vector.load %arg1[%c0, %c0_0] : memref<8x8xf32, #tpu.memory_space<vmem>>, vector<8x8xf32>
    %c0_1 = arith.constant 0 : index
    %c0_2 = arith.constant 0 : index
    %1 = vector.load %arg2[%c0_1, %c0_2] : memref<8x256xf32, #tpu.memory_space<vmem>>, vector<8x256xf32>
    %cst = arith.constant dense<0.000000e+00> : vector<8x256xf32>
    %2 = tpu.matmul %0, %1, %cst {dimension_numbers = #tpu.dot_dimension_numbers<[1], [0], [0], [1], [0, 0, 1, 1], [], []>} : vector<8x8xf32>, vector<8x256xf32>, vector<8x256xf32> -> vector<8x256xf32>
    %c0_3 = arith.constant 0 : index
    %c0_4 = arith.constant 0 : index
    %3 = vector.load %arg3[%c0_3, %c0_4] : memref<1x256xf32, #tpu.memory_space<vmem>>, vector<1x256xf32>
    %4 = vector.broadcast %3 : vector<1x256xf32> to vector<8x256xf32>
    %5 = arith.addf %2, %4 : vector<8x256xf32>
    %cst_5 = arith.constant 0.000000e+00 : f32
    %6 = vector.broadcast %cst_5 : f32 to vector<8x256xf32>
    %7 = arith.maximumf %5, %6 : vector<8x256xf32>
    %8 = arith.truncf %7 : vector<8x256xf32> to vector<8x256xbf16>
    %c0_6 = arith.constant 0 : index
    %c0_7 = arith.constant 0 : index
    %9 = vector.load %arg4[%c0_6, %c0_7] : memref<256x256xbf16, #tpu.memory_space<vmem>>, vector<256x256xbf16>
    %cst_8 = arith.constant dense<0.000000e+00> : vector<8x256xf32>
    %10 = tpu.matmul %8, %9, %cst_8 {dimension_numbers = #tpu.dot_dimension_numbers<[1], [0], [0], [1], [0, 0, 1, 1], [], []>} : vector<8x256xbf16>, vector<256x256xbf16>, vector<8x256xf32> -> vector<8x256xf32>
    %c0_9 = arith.constant 0 : index
    %c0_10 = arith.constant 0 : index
    %11 = vector.load %arg5[%c0_9, %c0_10] : memref<1x256xf32, #tpu.memory_space<vmem>>, vector<1x256xf32>
    %12 = vector.broadcast %11 : vector<1x256xf32> to vector<8x256xf32>
    %13 = arith.addf %10, %12 : vector<8x256xf32>
    %cst_11 = arith.constant 0.000000e+00 : f32
    %14 = vector.broadcast %cst_11 : f32 to vector<8x256xf32>
    %15 = arith.maximumf %13, %14 : vector<8x256xf32>
    %16 = arith.truncf %15 : vector<8x256xf32> to vector<8x256xbf16>
    %c0_12 = arith.constant 0 : index
    %c0_13 = arith.constant 0 : index
    %17 = vector.load %arg6[%c0_12, %c0_13] : memref<256x128xbf16, #tpu.memory_space<vmem>>, vector<256x128xbf16>
    %cst_14 = arith.constant dense<0.000000e+00> : vector<8x128xf32>
    %18 = tpu.matmul %16, %17, %cst_14 {dimension_numbers = #tpu.dot_dimension_numbers<[1], [0], [0], [1], [0, 0, 1, 1], [], []>} : vector<8x256xbf16>, vector<256x128xbf16>, vector<8x128xf32> -> vector<8x128xf32>
    %c0_15 = arith.constant 0 : index
    %c0_16 = arith.constant 0 : index
    %19 = vector.load %arg7[%c0_15, %c0_16] : memref<1x128xf32, #tpu.memory_space<vmem>>, vector<1x128xf32>
    %20 = vector.broadcast %19 : vector<1x128xf32> to vector<8x128xf32>
    %21 = arith.addf %18, %20 : vector<8x128xf32>
    %22 = math.tanh %21 : vector<8x128xf32>
    %c0_17 = arith.constant 0 : index
    %c0_18 = arith.constant 0 : index
    %23 = vector.load %arg8[%c0_17, %c0_18] : memref<1x128xf32, #tpu.memory_space<vmem>>, vector<1x128xf32>
    %24 = vector.broadcast %23 : vector<1x128xf32> to vector<8x128xf32>
    %25 = arith.mulf %22, %24 : vector<8x128xf32>
    %c0_19 = arith.constant 0 : index
    %c0_20 = arith.constant 0 : index
    %26 = vector.load %arg9[%c0_19, %c0_20] : memref<1x128xf32, #tpu.memory_space<vmem>>, vector<1x128xf32>
    %27 = vector.broadcast %26 : vector<1x128xf32> to vector<8x128xf32>
    %28 = arith.addf %25, %27 : vector<8x128xf32>
    %c0_21 = arith.constant 0 : index
    %c0_22 = arith.constant 0 : index
    %29 = vector.load %arg10[%c0_21, %c0_22] : memref<8x128xf32, #tpu.memory_space<vmem>>, vector<8x128xf32>
    tpu.vector_store %arg10[%c0_21, %c0_22], %28 {strides = array<i32>} : memref<8x128xf32, #tpu.memory_space<vmem>>, vector<8x128xf32>,
    return
  }
  func.func @transform_0(%arg0: i32) -> (i32, i32) {
    %c0_i32 = arith.constant 0 : i32
    %c0_i32_0 = arith.constant 0 : i32
    return %arg0, %c0_i32 : i32, i32
  }
  func.func @transform_1(%arg0: i32) -> (i32, i32) {
    %c0_i32 = arith.constant 0 : i32
    %c0_i32_0 = arith.constant 0 : i32
    %c0_i32_1 = arith.constant 0 : i32
    return %c0_i32, %c0_i32_0 : i32, i32
  }
  func.func @transform_2(%arg0: i32) -> (i32, i32) {
    %c0_i32 = arith.constant 0 : i32
    %c0_i32_0 = arith.constant 0 : i32
    %c0_i32_1 = arith.constant 0 : i32
    return %c0_i32, %c0_i32_0 : i32, i32
  }
  func.func @transform_3(%arg0: i32) -> (i32, i32) {
    %c0_i32 = arith.constant 0 : i32
    %c0_i32_0 = arith.constant 0 : i32
    %c0_i32_1 = arith.constant 0 : i32
    return %c0_i32, %c0_i32_0 : i32, i32
  }
  func.func @transform_4(%arg0: i32) -> (i32, i32) {
    %c0_i32 = arith.constant 0 : i32
    %c0_i32_0 = arith.constant 0 : i32
    %c0_i32_1 = arith.constant 0 : i32
    return %c0_i32, %c0_i32_0 : i32, i32
  }
  func.func @transform_5(%arg0: i32) -> (i32, i32) {
    %c0_i32 = arith.constant 0 : i32
    %c0_i32_0 = arith.constant 0 : i32
    %c0_i32_1 = arith.constant 0 : i32
    return %c0_i32, %c0_i32_0 : i32, i32
  }
  func.func @transform_6(%arg0: i32) -> (i32, i32) {
    %c0_i32 = arith.constant 0 : i32
    %c0_i32_0 = arith.constant 0 : i32
    %c0_i32_1 = arith.constant 0 : i32
    return %c0_i32, %c0_i32_0 : i32, i32
  }
  func.func @transform_7(%arg0: i32) -> (i32, i32) {
    %c0_i32 = arith.constant 0 : i32
    %c0_i32_0 = arith.constant 0 : i32
    %c0_i32_1 = arith.constant 0 : i32
    return %c0_i32, %c0_i32_0 : i32, i32
  }
  func.func @transform_8(%arg0: i32) -> (i32, i32) {
    %c0_i32 = arith.constant 0 : i32
    %c0_i32_0 = arith.constant 0 : i32
    %c0_i32_1 = arith.constant 0 : i32
    return %c0_i32, %c0_i32_0 : i32, i32
  }
  func.func @transform_9(%arg0: i32) -> (i32, i32) {
    %c0_i32 = arith.constant 0 : i32
    %c0_i32_0 = arith.constant 0 : i32
    return %arg0, %c0_i32 : i32, i32
  }
}

</mosaic_0001>

<llo_original>
// kernel: tpu_custom_call.1
$region0: #{tpu_custom_call.1}
  #allocation0 [shape = 'u32[]', space=smem, size = 0x4, offset = 0x4, fixed_abs, tag = 'smem constant byte address 0x4 - core index']
  #allocation1 [shape = 'u32[144,128]{1,0:T(1,128)}', space=vmem, size = 0x12000, scoped, tag = 'internal scratch']
  %s0 = inlined_call_operand.hbm [shape: f32[8,8], index: 0, kind: input, shape index: {}]
  %s1 = inlined_call_operand.hbm [shape: f32[8,256], index: 1, kind: input, shape index: {}]
  %s2 = inlined_call_operand.vmem [shape: f32[1,256], index: 2, kind: input, shape index: {}]
  %s3 = inlined_call_operand.hbm [shape: bf16[256,256], index: 3, kind: input, shape index: {}]
  %s4 = inlined_call_operand.vmem [shape: f32[1,256], index: 4, kind: input, shape index: {}]
  %s5 = inlined_call_operand.hbm [shape: bf16[256,128], index: 5, kind: input, shape index: {}]
  %s6 = inlined_call_operand.vmem [shape: f32[1,128], index: 6, kind: input, shape index: {}]
  %s7 = inlined_call_operand.vmem [shape: f32[1,128], index: 7, kind: input, shape index: {}]
  %s8 = inlined_call_operand.vmem [shape: f32[1,128], index: 8, kind: input, shape index: {}]
  %s9 = inlined_call_operand.hbm [shape: f32[8,128], index: 9, kind: output, shape index: {}]
  %s10 = sld [smem:[#allocation0]]
  $region62: #{tpu_custom_call.1} parent=0
    _
  %s12 = ssub.s32 1, %s10
  %s13 = scalar_select 0, %s12, %s10
  $region1: #{tpu_custom_call.1} parent=0
    #allocation2 [shape = 'u8[4096]{0}', space=vmem, size = 0x1000, scoped, tag = 'input window, operand 0, single buffered']
    #allocation3 [shape = 's32[1]{0}', space=sflag, size = 0x4, scoped, tag = 'scoped memory for tpu_custom_call.1']
    #allocation4 [shape = 's32[1]{0}', space=sflag, size = 0x4, scoped, tag = 'scoped memory for tpu_custom_call.1']
    #allocation5 [shape = 'u8[8192]{0}', space=vmem, size = 0x2000, scoped, tag = 'input window, operand 1, single buffered']
    #allocation6 [shape = 's32[1]{0}', space=sflag, size = 0x4, scoped, tag = 'scoped memory for tpu_custom_call.1']
    #allocation7 [shape = 'u8[131072]{0}', space=vmem, size = 0x20000, scoped, tag = 'input window, operand 3, single buffered']
    #allocation8 [shape = 'u8[65536]{0}', space=vmem, size = 0x10000, scoped, tag = 'input window, operand 5, single buffered']
    #allocation9 [shape = 's32[1]{0}', space=sflag, size = 0x4, scoped, tag = 'scoped memory for tpu_custom_call.1']
    #allocation10 [shape = 'u8[4096]{0}', space=vmem, size = 0x1000, scoped, tag = 'output window, operand 0, single buffered']
    %14 = vsyncpa [#allocation3], 0
    %15 = vsyncpa [#allocation6], 0
    %16 = vsyncpa [#allocation9], 0
    %17 = vsyncpa [#allocation4], 0
    // Predicated region
    $region2: #{tpu_custom_call.1} parent=1 // pred_check
      _
    $region3: #{tpu_custom_call.1} parent=1 // pred_check_branch
      %19 = sbr.rel (0) target = $region5
    $region4: #{tpu_custom_call.1} parent=1 // pred_region
      %s21 = ssub.s32 128, 128
      %22 = vsyncadd [#allocation3], %s21
      %s24 = sshll.u32 [#allocation2], 4
      %s25 = int_to_ptr.vmem [resolvable:$true] %s24
      %27 = dma.hbm_to_vmem [thread:$0]  %s0, 128, %s25, [#allocation3]
    $region5: #{tpu_custom_call.1} parent=1 // pred_fallthru
      _
    // Predicated region
    $region6: #{tpu_custom_call.1} parent=1 // pred_check
      _
    $region7: #{tpu_custom_call.1} parent=1 // pred_check_branch
      %29 = sbr.rel (0) target = $region9
    $region8: #{tpu_custom_call.1} parent=1 // pred_region
      %s31 = ssub.s32 256, 256
      %32 = vsyncadd [#allocation6], %s31
      %s34 = sshll.u32 [#allocation5], 4
      %s35 = int_to_ptr.vmem [resolvable:$true] %s34
      %37 = dma.hbm_to_vmem [thread:$0]  %s1, 256, %s35, [#allocation6]
    $region9: #{tpu_custom_call.1} parent=1 // pred_fallthru
      _
    // Predicated region
    $region10: #{tpu_custom_call.1} parent=1 // pred_check
      _
    $region11: #{tpu_custom_call.1} parent=1 // pred_check_branch
      %39 = sbr.rel (0) target = $region13
    $region12: #{tpu_custom_call.1} parent=1 // pred_region
      _
    $region13: #{tpu_custom_call.1} parent=1 // pred_fallthru
      _
    // Predicated region
    $region14: #{tpu_custom_call.1} parent=1 // pred_check
      _
    $region15: #{tpu_custom_call.1} parent=1 // pred_check_branch
      %41 = sbr.rel (0) target = $region17
    $region16: #{tpu_custom_call.1} parent=1 // pred_region
      %s43 = ssub.s32 4096, 4096
      %44 = vsyncadd [#allocation6], %s43
      %s45 = sshll.u32 [#allocation7], 4
      %s46 = int_to_ptr.vmem [resolvable:$true] %s45
      %51 = dma.hbm_to_vmem [thread:$0]  %s3, 4096, %s46, [#allocation6], 128, 128, 8
    $region17: #{tpu_custom_call.1} parent=1 // pred_fallthru
      _
    // Predicated region
    $region18: #{tpu_custom_call.1} parent=1 // pred_check
      _
    $region19: #{tpu_custom_call.1} parent=1 // pred_check_branch
      %53 = sbr.rel (0) target = $region21
    $region20: #{tpu_custom_call.1} parent=1 // pred_region
      _
    $region21: #{tpu_custom_call.1} parent=1 // pred_fallthru
      _
    // Predicated region
    $region22: #{tpu_custom_call.1} parent=1 // pred_check
      _
    $region23: #{tpu_custom_call.1} parent=1 // pred_check_branch
      %55 = sbr.rel (0) target = $region25
    $region24: #{tpu_custom_call.1} parent=1 // pred_region
      %s57 = ssub.s32 2048, 2048
      %58 = vsyncadd [#allocation9], %s57
      %s59 = sshll.u32 [#allocation8], 4
      %s60 = int_to_ptr.vmem [resolvable:$true] %s59
      %65 = dma.hbm_to_vmem [thread:$0]  %s5, 2048, %s60, [#allocation9], 64, 64, 4
    $region25: #{tpu_custom_call.1} parent=1 // pred_fallthru
      _
    // Predicated region
    $region26: #{tpu_custom_call.1} parent=1 // pred_check
      _
    $region27: #{tpu_custom_call.1} parent=1 // pred_check_branch
      %67 = sbr.rel (0) target = $region29
    $region28: #{tpu_custom_call.1} parent=1 // pred_region
      _
    $region29: #{tpu_custom_call.1} parent=1 // pred_fallthru
      _
    // Predicated region
    $region30: #{tpu_custom_call.1} parent=1 // pred_check
      _
    $region31: #{tpu_custom_call.1} parent=1 // pred_check_branch
      %69 = sbr.rel (0) target = $region33
    $region32: #{tpu_custom_call.1} parent=1 // pred_region
      _
    $region33: #{tpu_custom_call.1} parent=1 // pred_fallthru
      _
    // Predicated region
    $region34: #{tpu_custom_call.1} parent=1 // pred_check
      _
    $region35: #{tpu_custom_call.1} parent=1 // pred_check_branch
      %71 = sbr.rel (0) target = $region37
    $region36: #{tpu_custom_call.1} parent=1 // pred_region
      _
    $region37: #{tpu_custom_call.1} parent=1 // pred_fallthru
      _
    // Predicated region
    $region38: #{tpu_custom_call.1} parent=1 // pred_check
      _
    $region39: #{tpu_custom_call.1} parent=1 // pred_check_branch
      %73 = sbr.rel (0) target = $region41
    $region40: #{tpu_custom_call.1} parent=1 // pred_region
      %74 = dma.done [#allocation3], 128
    $region41: #{tpu_custom_call.1} parent=1 // pred_fallthru
      _
    // Predicated region
    $region42: #{tpu_custom_call.1} parent=1 // pred_check
      _
    $region43: #{tpu_custom_call.1} parent=1 // pred_check_branch
      %76 = sbr.rel (0) target = $region45
    $region44: #{tpu_custom_call.1} parent=1 // pred_region
      %77 = dma.done [#allocation6], 256
    $region45: #{tpu_custom_call.1} parent=1 // pred_fallthru
      _
    // Predicated region
    $region46: #{tpu_custom_call.1} parent=1 // pred_check
      _
    $region47: #{tpu_custom_call.1} parent=1 // pred_check_branch
      %79 = sbr.rel (0) target = $region49
    $region48: #{tpu_custom_call.1} parent=1 // pred_region
      %80 = dma.done [#allocation6], 4096
    $region49: #{tpu_custom_call.1} parent=1 // pred_fallthru
      _
    // Predicated region
    $region50: #{tpu_custom_call.1} parent=1 // pred_check
      _
    $region51: #{tpu_custom_call.1} parent=1 // pred_check_branch
      %82 = sbr.rel (0) target = $region53
    $region52: #{tpu_custom_call.1} parent=1 // pred_region
      %83 = dma.done [#allocation9], 2048
    $region53: #{tpu_custom_call.1} parent=1 // pred_fallthru
      _
    %v85 = vld [vmem:[#allocation2] sm:$0xff]
    %v86 = vld [vmem:[#allocation5] sm:$0xff]
    %v87 = vld [vmem:[#allocation5 + $0x8] sm:$0xff]
    %v88 = vld [vmem:[%s2] sm:$0x3]
    %v90 = vlaneseq
    %v91 = vshrl.u32 %v90, 7
    %v92 = vsub.s32 0, %v91
    %v93 = vrot.slane %v88, %v92
    %v94 = vlaneseq
    %v95 = vshrl.u32 %v94, 7
    %v96 = vsub.s32 1, %v95
    %v97 = vrot.slane %v88, %v96
    %vm100 = vcmask 64512
    %v102 = vsel %vm100, %v85, 0
    %104 = vmatprep.subr.mxu0 %v87
    %105 = vmatpush1.msra.mxu0 %v86
    %106 = vmatprep.subr.mxu0 0.0
    %107 = vmatpush1.msra.mxu0 0.0
    %108 = vmatprep.subr.mxu0 0.0
    %109 = vmatpush1.msra.mxu0 0.0
    %110 = vmatprep.subr.mxu0 0.0
    %111 = vmatpush1.msra.mxu0 0.0
    %112 = vmatprep.subr.mxu0 0.0
    %113 = vmatpush1.msra.mxu0 0.0
    %114 = vmatprep.subr.mxu0 0.0
    %115 = vmatpush1.msra.mxu0 0.0
    %116 = vmatprep.subr.mxu0 0.0
    %117 = vmatpush1.msra.mxu0 0.0
    %118 = vmatprep.subr.mxu0 0.0
    %119 = vmatpush1.msra.mxu0 0.0
    %120 = vmatprep.subr.mxu0 0.0
    %121 = vmatpush1.msra.mxu0 0.0
    %122 = vmatprep.subr.mxu0 0.0
    %123 = vmatpush1.msra.mxu0 0.0
    %124 = vmatprep.subr.mxu0 0.0
    %125 = vmatpush1.msra.mxu0 0.0
    %126 = vmatprep.subr.mxu0 0.0
    %127 = vmatpush1.msra.mxu0 0.0
    %128 = vmatprep.subr.mxu0 0.0
    %129 = vmatpush1.msra.mxu0 0.0
    %130 = vmatprep.subr.mxu0 0.0
    %131 = vmatpush1.msra.mxu0 0.0
    %132 = vmatprep.subr.mxu0 0.0
    %133 = vmatpush1.msra.mxu0 0.0
    %134 = vmatprep.subr.mxu0 0.0
    %135 = vmatpush1.msra.mxu0 0.0
    %136 = vmatprep.subr.mxu0 0.0
    %137 = vmatpush1.msra.mxu0 0.0
    %138 = vmatprep.subr.mxu0 0.0
    %139 = vmatpush1.msra.mxu0 0.0
    %140 = vmatprep.subr.mxu0 0.0
    %141 = vmatpush1.msra.mxu0 0.0
    %142 = vmatprep.subr.mxu0 0.0
    %143 = vmatpush1.msra.mxu0 0.0
    %144 = vmatprep.subr.mxu0 0.0
    %145 = vmatpush1.msra.mxu0 0.0
    %146 = vmatprep.subr.mxu0 0.0
    %147 = vmatpush1.msra.mxu0 0.0
    %148 = vmatprep.subr.mxu0 0.0
    %149 = vmatpush1.msra.mxu0 0.0
    %150 = vmatprep.subr.mxu0 0.0
    %151 = vmatpush1.msra.mxu0 0.0
    %152 = vmatprep.subr.mxu0 0.0
    %153 = vmatpush1.msra.mxu0 0.0
    %154 = vmatprep.subr.mxu0 0.0
    %155 = vmatpush1.msra.mxu0 0.0
    %156 = vmatprep.subr.mxu0 0.0
    %157 = vmatpush1.msra.mxu0 0.0
    %158 = vmatprep.subr.mxu0 0.0
    %159 = vmatpush1.msra.mxu0 0.0
    %160 = vmatprep.subr.mxu0 0.0
    %161 = vmatpush1.msra.mxu0 0.0
    %162 = vmatprep.subr.mxu0 0.0
    %163 = vmatpush1.msra.mxu0 0.0
    %164 = vmatprep.subr.mxu0 0.0
    %165 = vmatpush1.msra.mxu0 0.0
    %166 = vmatprep.subr.mxu0 0.0
    %167 = vmatpush1.msra.mxu0 0.0
    %168 = vmatprep.mubr.f32.mxu0 0.0
    %169 = vmatmul.mubr.f32.gmra.mrb[0].mxu0 %v102
    %v170 = vpop.f32.mrb[0].mxu0
    %v171 = vadd.f32 %v93, %v170
    %v172 = vpop.f32.mrb[0].mxu0
    %v173 = vadd.f32 %v97, %v172
    %174 = vdwg.mxu0
    %v175 = vmax.f32 %v171, 0.0
    %v176 = vmax.f32 %v173, 0.0
    %v177 = vpack.c.bf16 %v175, %v175
    %v178 = vpack.c.bf16 %v176, %v176
    %v179 = vld [vmem:[#allocation7] sm:$0xff]
    %v180 = vld [vmem:[#allocation7 + $0x8] sm:$0xff]
    %v181 = vld [vmem:[#allocation7 + $0x10] sm:$0xff]
    %v182 = vld [vmem:[#allocation7 + $0x18] sm:$0xff]
    %v183 = vld [vmem:[#allocation7 + $0x20] sm:$0xff]
    %v184 = vld [vmem:[#allocation7 + $0x28] sm:$0xff]
    %v185 = vld [vmem:[#allocation7 + $0x30] sm:$0xff]
    %v186 = vld [vmem:[#allocation7 + $0x38] sm:$0xff]
    %v187 = vld [vmem:[#allocation7 + $0x40] sm:$0xff]
    %v188 = vld [vmem:[#allocation7 + $0x48] sm:$0xff]
    %v189 = vld [vmem:[#allocation7 + $0x50] sm:$0xff]
    %v190 = vld [vmem:[#allocation7 + $0x58] sm:$0xff]
    %v191 = vld [vmem:[#allocation7 + $0x60] sm:$0xff]
    %v192 = vld [vmem:[#allocation7 + $0x68] sm:$0xff]
    %v193 = vld [vmem:[#allocation7 + $0x70] sm:$0xff]
    %v194 = vld [vmem:[#allocation7 + $0x78] sm:$0xff]
    %v195 = vld [vmem:[#allocation7 + $0x80] sm:$0xff]
    %v196 = vld [vmem:[#allocation7 + $0x88] sm:$0xff]
    %v197 = vld [vmem:[#allocation7 + $0x90] sm:$0xff]
    %v198 = vld [vmem:[#allocation7 + $0x98] sm:$0xff]
    %v199 = vld [vmem:[#allocation7 + $0xa0] sm:$0xff]
    %v200 = vld [vmem:[#allocation7 + $0xa8] sm:$0xff]
    %v201 = vld [vmem:[#allocation7 + $0xb0] sm:$0xff]
    %v202 = vld [vmem:[#allocation7 + $0xb8] sm:$0xff]
    %v203 = vld [vmem:[#allocation7 + $0xc0] sm:$0xff]
    %v204 = vld [vmem:[#allocation7 + $0xc8] sm:$0xff]
    %v205 = vld [vmem:[#allocation7 + $0xd0] sm:$0xff]
    %v206 = vld [vmem:[#allocation7 + $0xd8] sm:$0xff]
    %v207 = vld [vmem:[#allocation7 + $0xe0] sm:$0xff]
    %v208 = vld [vmem:[#allocation7 + $0xe8] sm:$0xff]
    %v209 = vld [vmem:[#allocation7 + $0xf0] sm:$0xff]
    %v210 = vld [vmem:[#allocation7 + $0xf8] sm:$0xff]
    %v211 = vld [vmem:[%s4] sm:$0x3]
    %v213 = vlaneseq
    %v214 = vshrl.u32 %v213, 7
    %v215 = vsub.s32 0, %v214
    %v216 = vrot.slane %v211, %v215
    %v217 = vlaneseq
    %v218 = vshrl.u32 %v217, 7
    %v219 = vsub.s32 1, %v218
    %v220 = vrot.slane %v211, %v219
    %v255 = vunpack.c.l.b16 %v179
    %v256 = vunpack.c.h.b16 %v179
    %v257 = vunpack.c.l.b16 %v180
    %v258 = vunpack.c.h.b16 %v180
    %v259 = vunpack.c.l.b16 %v181
    %v260 = vunpack.c.h.b16 %v181
    %v261 = vunpack.c.l.b16 %v182
    %v262 = vunpack.c.h.b16 %v182
    %v263 = vunpack.c.l.b16 %v183
    %v264 = vunpack.c.h.b16 %v183
    %v265 = vunpack.c.l.b16 %v184
    %v266 = vunpack.c.h.b16 %v184
    %v267 = vunpack.c.l.b16 %v185
    %v268 = vunpack.c.h.b16 %v185
    %v269 = vunpack.c.l.b16 %v186
    %v270 = vunpack.c.h.b16 %v186
    %v271 = vunpack.c.l.b16 %v187
    %v272 = vunpack.c.h.b16 %v187
    %v273 = vunpack.c.l.b16 %v188
    %v274 = vunpack.c.h.b16 %v188
    %v275 = vunpack.c.l.b16 %v189
    %v276 = vunpack.c.h.b16 %v189
    %v277 = vunpack.c.l.b16 %v190
    %v278 = vunpack.c.h.b16 %v190
    %v279 = vunpack.c.l.b16 %v191
    %v280 = vunpack.c.h.b16 %v191
    %v281 = vunpack.c.l.b16 %v192
    %v282 = vunpack.c.h.b16 %v192
    %v283 = vunpack.c.l.b16 %v193
    %v284 = vunpack.c.h.b16 %v193
    %v285 = vunpack.c.l.b16 %v194
    %v286 = vunpack.c.h.b16 %v194
    %v287 = vunpack.c.l.b16 %v195
    %v288 = vunpack.c.h.b16 %v195
    %v289 = vunpack.c.l.b16 %v196
    %v290 = vunpack.c.h.b16 %v196
    %v291 = vunpack.c.l.b16 %v197
    %v292 = vunpack.c.h.b16 %v197
    %v293 = vunpack.c.l.b16 %v198
    %v294 = vunpack.c.h.b16 %v198
    %v295 = vunpack.c.l.b16 %v199
    %v296 = vunpack.c.h.b16 %v199
    %v297 = vunpack.c.l.b16 %v200
    %v298 = vunpack.c.h.b16 %v200
    %v299 = vunpack.c.l.b16 %v201
    %v300 = vunpack.c.h.b16 %v201
    %v301 = vunpack.c.l.b16 %v202
    %v302 = vunpack.c.h.b16 %v202
    %v303 = vunpack.c.l.b16 %v203
    %v304 = vunpack.c.h.b16 %v203
    %v305 = vunpack.c.l.b16 %v204
    %v306 = vunpack.c.h.b16 %v204
    %v307 = vunpack.c.l.b16 %v205
    %v308 = vunpack.c.h.b16 %v205
    %v309 = vunpack.c.l.b16 %v206
    %v310 = vunpack.c.h.b16 %v206
    %v311 = vunpack.c.l.b16 %v207
    %v312 = vunpack.c.h.b16 %v207
    %v313 = vunpack.c.l.b16 %v208
    %v314 = vunpack.c.h.b16 %v208
    %v315 = vunpack.c.l.b16 %v209
    %v316 = vunpack.c.h.b16 %v209
    %v317 = vunpack.c.l.b16 %v210
    %v318 = vunpack.c.h.b16 %v210
    %v319 = vpack.c.b16 %v257, %v255
    %v320 = vpack.c.b16 %v258, %v256
    %v321 = vpack.c.b16 %v261, %v259
    %v322 = vpack.c.b16 %v262, %v260
    %v323 = vpack.c.b16 %v265, %v263
    %v324 = vpack.c.b16 %v266, %v264
    %v325 = vpack.c.b16 %v269, %v267
    %v326 = vpack.c.b16 %v270, %v268
    %v327 = vpack.c.b16 %v273, %v271
    %v328 = vpack.c.b16 %v274, %v272
    %v329 = vpack.c.b16 %v277, %v275
    %v330 = vpack.c.b16 %v278, %v276
    %v331 = vpack.c.b16 %v281, %v279
    %v332 = vpack.c.b16 %v282, %v280
    %v333 = vpack.c.b16 %v285, %v283
    %v334 = vpack.c.b16 %v286, %v284
    %v335 = vpack.c.b16 %v289, %v287
    %v336 = vpack.c.b16 %v290, %v288
    %v337 = vpack.c.b16 %v293, %v291
    %v338 = vpack.c.b16 %v294, %v292
    %v339 = vpack.c.b16 %v297, %v295
    %v340 = vpack.c.b16 %v298, %v296
    %v341 = vpack.c.b16 %v301, %v299
    %v342 = vpack.c.b16 %v302, %v300
    %v343 = vpack.c.b16 %v305, %v303
    %v344 = vpack.c.b16 %v306, %v304
    %v345 = vpack.c.b16 %v309, %v307
    %v346 = vpack.c.b16 %v310, %v308
    %v347 = vpack.c.b16 %v313, %v311
    %v348 = vpack.c.b16 %v314, %v312
    %v349 = vpack.c.b16 %v317, %v315
    %v350 = vpack.c.b16 %v318, %v316
    %383 = vmatprep.subr.bf16.mxu0 %v320
    %384 = vmatpush1.bf16.msra.mxu0 %v319
    %385 = vmatprep.subr.bf16.mxu0 %v322
    %386 = vmatpush1.bf16.msra.mxu0 %v321
    %387 = vmatprep.subr.bf16.mxu0 %v324
    %388 = vmatpush1.bf16.msra.mxu0 %v323
    %389 = vmatprep.subr.bf16.mxu0 %v326
    %390 = vmatpush1.bf16.msra.mxu0 %v325
    %391 = vmatprep.subr.bf16.mxu0 %v328
    %392 = vmatpush1.bf16.msra.mxu0 %v327
    %393 = vmatprep.subr.bf16.mxu0 %v330
    %394 = vmatpush1.bf16.msra.mxu0 %v329
    %395 = vmatprep.subr.bf16.mxu0 %v332
    %396 = vmatpush1.bf16.msra.mxu0 %v331
    %397 = vmatprep.subr.bf16.mxu0 %v334
    %398 = vmatpush1.bf16.msra.mxu0 %v333
    %399 = vmatprep.subr.bf16.mxu0 %v336
    %400 = vmatpush1.bf16.msra.mxu0 %v335
    %401 = vmatprep.subr.bf16.mxu0 %v338
    %402 = vmatpush1.bf16.msra.mxu0 %v337
    %403 = vmatprep.subr.bf16.mxu0 %v340
    %404 = vmatpush1.bf16.msra.mxu0 %v339
    %405 = vmatprep.subr.bf16.mxu0 %v342
    %406 = vmatpush1.bf16.msra.mxu0 %v341
    %407 = vmatprep.subr.bf16.mxu0 %v344
    %408 = vmatpush1.bf16.msra.mxu0 %v343
    %409 = vmatprep.subr.bf16.mxu0 %v346
    %410 = vmatpush1.bf16.msra.mxu0 %v345
    %411 = vmatprep.subr.bf16.mxu0 %v348
    %412 = vmatpush1.bf16.msra.mxu0 %v347
    %413 = vmatprep.subr.bf16.mxu0 %v350
    %414 = vmatpush1.bf16.msra.mxu0 %v349
    %415 = vmatprep.mubr.bf16.mxu0 %v178
    %416 = vmatmul.mubr.bf16.gmra.mrb[0].mxu0 %v177
    %v417 = vpop.f32.mrb[0].mxu0
    %v418 = vadd.f32 %v216, %v417
    %v419 = vpop.f32.mrb[0].mxu0
    %v420 = vadd.f32 %v220, %v419
    %v421 = vpop.f32.mrb[0].mxu0
    %v422 = vpop.f32.mrb[0].mxu0
    %423 = vdwg.mxu0
    %v424 = vmax.f32 %v418, 0.0
    %v425 = vmax.f32 %v420, 0.0
    %v426 = vpack.c.bf16 %v424, %v424
    %v427 = vpack.c.bf16 %v425, %v425
    %v428 = vld [vmem:[#allocation8] sm:$0xf]
    %v429 = vld [vmem:[#allocation8 + $0x4] sm:$0xf]
    %v430 = vld [vmem:[#allocation8 + $0x8] sm:$0xf]
    %v431 = vld [vmem:[#allocation8 + $0xc] sm:$0xf]
    %v432 = vld [vmem:[#allocation8 + $0x10] sm:$0xf]
    %v433 = vld [vmem:[#allocation8 + $0x14] sm:$0xf]
    %v434 = vld [vmem:[#allocation8 + $0x18] sm:$0xf]
    %v435 = vld [vmem:[#allocation8 + $0x1c] sm:$0xf]
    %v436 = vld [vmem:[#allocation8 + $0x20] sm:$0xf]
    %v437 = vld [vmem:[#allocation8 + $0x24] sm:$0xf]
    %v438 = vld [vmem:[#allocation8 + $0x28] sm:$0xf]
    %v439 = vld [vmem:[#allocation8 + $0x2c] sm:$0xf]
    %v440 = vld [vmem:[#allocation8 + $0x30] sm:$0xf]
    %v441 = vld [vmem:[#allocation8 + $0x34] sm:$0xf]
    %v442 = vld [vmem:[#allocation8 + $0x38] sm:$0xf]
    %v443 = vld [vmem:[#allocation8 + $0x3c] sm:$0xf]
    %v444 = vld [vmem:[#allocation8 + $0x40] sm:$0xf]
    %v445 = vld [vmem:[#allocation8 + $0x44] sm:$0xf]
    %v446 = vld [vmem:[#allocation8 + $0x48] sm:$0xf]
    %v447 = vld [vmem:[#allocation8 + $0x4c] sm:$0xf]
    %v448 = vld [vmem:[#allocation8 + $0x50] sm:$0xf]
    %v449 = vld [vmem:[#allocation8 + $0x54] sm:$0xf]
    %v450 = vld [vmem:[#allocation8 + $0x58] sm:$0xf]
    %v451 = vld [vmem:[#allocation8 + $0x5c] sm:$0xf]
    %v452 = vld [vmem:[#allocation8 + $0x60] sm:$0xf]
    %v453 = vld [vmem:[#allocation8 + $0x64] sm:$0xf]
    %v454 = vld [vmem:[#allocation8 + $0x68] sm:$0xf]
    %v455 = vld [vmem:[#allocation8 + $0x6c] sm:$0xf]
    %v456 = vld [vmem:[#allocation8 + $0x70] sm:$0xf]
    %v457 = vld [vmem:[#allocation8 + $0x74] sm:$0xf]
    %v458 = vld [vmem:[#allocation8 + $0x78] sm:$0xf]
    %v459 = vld [vmem:[#allocation8 + $0x7c] sm:$0xf]
    %v460 = vld [vmem:[%s6] sm:$0x1]
    %v462 = vlaneseq
    %v463 = vshrl.u32 %v462, 7
    %v464 = vsub.s32 0, %v463
    %v465 = vrot.slane %v460, %v464
    %v499 = vunpack.c.l.b16 %v428
    %v500 = vunpack.c.l.b16 %v429
    %v501 = vunpack.c.l.b16 %v430
    %v502 = vunpack.c.l.b16 %v431
    %v503 = vunpack.c.l.b16 %v432
    %v504 = vunpack.c.l.b16 %v433
    %v505 = vunpack.c.l.b16 %v434
    %v506 = vunpack.c.l.b16 %v435
    %v507 = vunpack.c.l.b16 %v436
    %v508 = vunpack.c.l.b16 %v437
    %v509 = vunpack.c.l.b16 %v438
    %v510 = vunpack.c.l.b16 %v439
    %v511 = vunpack.c.l.b16 %v440
    %v512 = vunpack.c.l.b16 %v441
    %v513 = vunpack.c.l.b16 %v442
    %v514 = vunpack.c.l.b16 %v443
    %v515 = vunpack.c.l.b16 %v444
    %v516 = vunpack.c.l.b16 %v445
    %v517 = vunpack.c.l.b16 %v446
    %v518 = vunpack.c.l.b16 %v447
    %v519 = vunpack.c.l.b16 %v448
    %v520 = vunpack.c.l.b16 %v449
    %v521 = vunpack.c.l.b16 %v450
    %v522 = vunpack.c.l.b16 %v451
    %v523 = vunpack.c.l.b16 %v452
    %v524 = vunpack.c.l.b16 %v453
    %v525 = vunpack.c.l.b16 %v454
    %v526 = vunpack.c.l.b16 %v455
    %v527 = vunpack.c.l.b16 %v456
    %v528 = vunpack.c.l.b16 %v457
    %v529 = vunpack.c.l.b16 %v458
    %v530 = vunpack.c.l.b16 %v459
    %v531 = vpack.c.b16 %v500, %v499
    %v532 = vpack.c.b16 %v502, %v501
    %v533 = vpack.c.b16 %v504, %v503
    %v534 = vpack.c.b16 %v506, %v505
    %v535 = vpack.c.b16 %v508, %v507
    %v536 = vpack.c.b16 %v510, %v509
    %v537 = vpack.c.b16 %v512, %v511
    %v538 = vpack.c.b16 %v514, %v513
    %v539 = vpack.c.b16 %v516, %v515
    %v540 = vpack.c.b16 %v518, %v517
    %v541 = vpack.c.b16 %v520, %v519
    %v542 = vpack.c.b16 %v522, %v521
    %v543 = vpack.c.b16 %v524, %v523
    %v544 = vpack.c.b16 %v526, %v525
    %v545 = vpack.c.b16 %v528, %v527
    %v546 = vpack.c.b16 %v530, %v529
    %563 = vmatprep.subr.bf16.mxu0 0
    %564 = vmatpush1.bf16.msra.mxu0 %v531
    %565 = vmatprep.subr.bf16.mxu0 0
    %566 = vmatpush1.bf16.msra.mxu0 %v532
    %567 = vmatprep.subr.bf16.mxu0 0
    %568 = vmatpush1.bf16.msra.mxu0 %v533
    %569 = vmatprep.subr.bf16.mxu0 0
    %570 = vmatpush1.bf16.msra.mxu0 %v534
    %571 = vmatprep.subr.bf16.mxu0 0
    %572 = vmatpush1.bf16.msra.mxu0 %v535
    %573 = vmatprep.subr.bf16.mxu0 0
    %574 = vmatpush1.bf16.msra.mxu0 %v536
    %575 = vmatprep.subr.bf16.mxu0 0
    %576 = vmatpush1.bf16.msra.mxu0 %v537
    %577 = vmatprep.subr.bf16.mxu0 0
    %578 = vmatpush1.bf16.msra.mxu0 %v538
    %579 = vmatprep.subr.bf16.mxu0 0
    %580 = vmatpush1.bf16.msra.mxu0 %v539
    %581 = vmatprep.subr.bf16.mxu0 0
    %582 = vmatpush1.bf16.msra.mxu0 %v540
    %583 = vmatprep.subr.bf16.mxu0 0
    %584 = vmatpush1.bf16.msra.mxu0 %v541
    %585 = vmatprep.subr.bf16.mxu0 0
    %586 = vmatpush1.bf16.msra.mxu0 %v542
    %587 = vmatprep.subr.bf16.mxu0 0
    %588 = vmatpush1.bf16.msra.mxu0 %v543
    %589 = vmatprep.subr.bf16.mxu0 0
    %590 = vmatpush1.bf16.msra.mxu0 %v544
    %591 = vmatprep.subr.bf16.mxu0 0
    %592 = vmatpush1.bf16.msra.mxu0 %v545
    %593 = vmatprep.subr.bf16.mxu0 0
    %594 = vmatpush1.bf16.msra.mxu0 %v546
    %595 = vmatprep.mubr.bf16.mxu0 %v427
    %596 = vmatmul.mubr.bf16.gmra.mrb[0].mxu0 %v426
    %v597 = vpop.f32.mrb[0].mxu0
    %v598 = vadd.f32 %v465, %v597
    %v599 = vpop.f32.mrb[0].mxu0
    %v600 = vpop.f32.mrb[0].mxu0
    %v601 = vpop.f32.mrb[0].mxu0
    %602 = vdwg.mxu0
    %v603 = vtanh.pop %v598
    %v604 = vld [vmem:[%s7] sm:$0x1]
    %v606 = vlaneseq
    %v607 = vshrl.u32 %v606, 7
    %v608 = vsub.s32 0, %v607
    %v609 = vrot.slane %v604, %v608
    %v611 = vmul.f32 %v603, %v609
    %v612 = vld [vmem:[%s8] sm:$0x1]
    %v614 = vlaneseq
    %v615 = vshrl.u32 %v614, 7
    %v616 = vsub.s32 0, %v615
    %v617 = vrot.slane %v612, %v616
    %v619 = vadd.f32 %v611, %v617
    %620 = vst [vmem:[#allocation10] sm:$0xff] %v619
    // Predicated region
    $region54: #{tpu_custom_call.1} parent=1 // pred_check
      _
    $region55: #{tpu_custom_call.1} parent=1 // pred_check_branch
      %622 = sbr.rel (0) target = $region57
    $region56: #{tpu_custom_call.1} parent=1 // pred_region
      %s624 = ssub.s32 128, 128
      %625 = vsyncadd [#allocation4], %s624
      %s627 = sshll.u32 [#allocation10], 4
      %s628 = int_to_ptr.vmem [resolvable:$true] %s627
      %630 = dma.vmem_to_hbm [thread:$0]  %s628, 128, %s9, [#allocation4]
    $region57: #{tpu_custom_call.1} parent=1 // pred_fallthru
      _
    // Predicated region
    $region58: #{tpu_custom_call.1} parent=1 // pred_check
      _
    $region59: #{tpu_custom_call.1} parent=1 // pred_check_branch
      %632 = sbr.rel (0) target = $region61
    $region60: #{tpu_custom_call.1} parent=1 // pred_region
      %633 = dma.done [#allocation4], 128
    $region61: #{tpu_custom_call.1} parent=1 // pred_fallthru
      _
    %634 = vsyncpa [#allocation3], 1
    %635 = vsyncpa [#allocation6], 1
    %636 = vsyncpa [#allocation9], 1
    %637 = vsyncpa [#allocation4], 1

</llo_original>
